<compile_context>
chip_gen: v7x
topology: tpu7x:2x2x1
jax: 0.10.0
libtpu: 0.0.40
codegen_flags: <defaults>
</compile_context>

<pallas_src>
import functools
import math

import jax
import jax.numpy as jnp
from jax.experimental import pallas as pl
from jax.experimental.pallas import tpu as pltpu


def _round_up(x, m):
    return (x + m - 1) // m * m


# ---------------------------------------------------------------------------
# Kernel: feature-major twin-Q MLP (batch on lanes).
# ---------------------------------------------------------------------------
def critic_kernel(x_ref, w1t_ref, w2t_ref, w3t_ref, b_ref, q_ref):
    """Both Q-heads in one pass, feature-major.

    x_ref  : [in_pad, TB]  (s||a)^T, zero-padded feature rows, batch on lanes
    w1t_ref: [H2, in_pad]  rows 0..H-1 = w1^T, rows H..2H-1 = w4^T
    w2t_ref: [H2, H2]      block-diag(w2^T, w5^T)
    w3t_ref: [8, H2]       row 0 = w3^T (cols 0..H-1), row 1 = w6^T (cols H..2H-1)
    b_ref  : [H2, 8]       col 0 = b1|b4, col 1 = b2|b5, col 2 rows 0,1 = b3,b6
    q_ref  : [8, TB]       row 0 = q1, row 1 = q2 (rows 2..7 are zero)
    """
    f32 = jnp.float32
    x = x_ref[...]
    b = b_ref[...]

    # Layer 1/4: single K=in_pad dot for both heads (concat fused by the wrapper).
    h = jnp.dot(w1t_ref[...], x, preferred_element_type=f32) + b[:, 0:1]
    h = jnp.maximum(h, 0.0)

    # Layer 2/5: block-diagonal [2H, 2H].
    h = jnp.dot(w2t_ref[...], h, preferred_element_type=f32) + b[:, 1:2]
    h = jnp.maximum(h, 0.0)

    # Layer 3/6: [8, 2H] (rows 0/1 are the two heads), full-width lane-dense result.
    q = jnp.dot(w3t_ref[...], h, preferred_element_type=f32) + b[0:8, 2:3]
    q_ref[...] = q.astype(q_ref.dtype)


# ---------------------------------------------------------------------------
# Parameter packing (one-time, outside the kernel).
# ---------------------------------------------------------------------------
def pack_critic_params(params, state_dim, action_dim, hidden):
    """Repack the 12 per-layer tensors into feature-major merged buffers."""
    in_dim = state_dim + action_dim
    in_pad = _round_up(in_dim, 8)
    h2 = _round_up(2 * hidden, 8)
    H = hidden

    w1t = jnp.zeros((h2, in_pad), jnp.float32)
    w1t = w1t.at[:H, :in_dim].set(params["w1"].T)            # head 1
    w1t = w1t.at[H:2 * H, :in_dim].set(params["w4"].T)        # head 2

    w2t = jnp.zeros((h2, h2), jnp.float32)
    w2t = w2t.at[:H, :H].set(params["w2"].T)
    w2t = w2t.at[H:2 * H, H:2 * H].set(params["w5"].T)

    w3t = jnp.zeros((8, h2), jnp.float32)
    w3t = w3t.at[0, :H].set(params["w3"][:, 0])
    w3t = w3t.at[1, H:2 * H].set(params["w6"][:, 0])

    b = jnp.zeros((h2, 8), jnp.float32)
    b = b.at[:H, 0].set(params["b1"][0])
    b = b.at[H:2 * H, 0].set(params["b4"][0])
    b = b.at[:H, 1].set(params["b2"][0])
    b = b.at[H:2 * H, 1].set(params["b5"][0])
    b = b.at[0, 2].set(params["b3"][0, 0])
    b = b.at[1, 2].set(params["b6"][0, 0])

    return {"w1t": w1t, "w2t": w2t, "w3t": w3t, "b": b}


# ---------------------------------------------------------------------------
# Wrapper.
# ---------------------------------------------------------------------------
def _choose_tiling(batch, tile_b):
    """Pick (tile, num_tiles): lane tiles are multiples of 128 when tiled, the
    grid is even (balanced across v7x's two TensorCores), and the last tile is
    nearly full (no whole-extra-tile padding)."""
    if batch < 1024:
        return batch, 1            # single step, full-array blocks (any size legal)
    num_tiles = max(2, math.ceil(batch / tile_b))
    num_tiles += num_tiles % 2     # even grid -> balanced 2-TC split on v7x
    tile = _round_up(math.ceil(batch / num_tiles), 128)
    return tile, num_tiles


@functools.partial(jax.jit, static_argnames=("tile_b",))
def critic_forward(s, a, packed, *, tile_b=8192):
    batch, state_dim = s.shape
    action_dim = a.shape[1]
    in_dim = state_dim + action_dim
    h2, in_pad = packed["w1t"].shape

    tile, num_tiles = _choose_tiling(batch, tile_b)
    b_pad = tile * num_tiles

    # Concat + transpose to feature-major [in_pad, B] (sanctioned wrapper-side work).
    sa = jnp.concatenate([s.astype(jnp.float32), a.astype(jnp.float32)], axis=1)
    if in_pad != in_dim:
        sa = jnp.pad(sa, ((0, 0), (0, in_pad - in_dim)))
    x_t = sa.T
    if b_pad != batch:
        x_t = jnp.pad(x_t, ((0, 0), (0, b_pad - batch)))

    q_t = pl.pallas_call(
        critic_kernel,
        out_shape=jax.ShapeDtypeStruct((8, b_pad), jnp.float32),
        grid_spec=pltpu.PrefetchScalarGridSpec(
            num_scalar_prefetch=0,
            grid=(num_tiles,),
            in_specs=[
                pl.BlockSpec((in_pad, tile), lambda i: (0, i)),   # activations, batch on lanes
                pl.BlockSpec((h2, in_pad), lambda i: (0, 0)),     # w1t  (VMEM-resident)
                pl.BlockSpec((h2, h2), lambda i: (0, 0)),         # w2t  (VMEM-resident)
                pl.BlockSpec((8, h2), lambda i: (0, 0)),          # w3t  (VMEM-resident)
                pl.BlockSpec((h2, 8), lambda i: (0, 0)),          # biases
            ],
            out_specs=pl.BlockSpec((8, tile), lambda i: (0, i)),  # lane-dense output
        ),
        compiler_params=pltpu.CompilerParams(
            dimension_semantics=("parallel",),        # 2x TC sharding on v7x
            vmem_limit_bytes=48 * 1024 * 1024,        # > v5e 16MiB default, < v7x 64MiB phys
        ),
    )(x_t, packed["w1t"], packed["w2t"], packed["w3t"], packed["b"])

    q1 = q_t[0, :batch][:, None]
    q2 = q_t[1, :batch][:, None]
    return q1, q2


# ---------------------------------------------------------------------------
# Init + pure-JAX reference for correctness checking.
# ---------------------------------------------------------------------------
def init_critic_params(key, state_dim, action_dim, hidden_width):
    """Deterministic init mimicking PyTorch nn.Linear (uniform +/- 1/sqrt(fan_in)).

    Weights are stored as [fan_in, fan_out] (i.e. already transposed vs. torch)."""
    in_dim = state_dim + action_dim
    layer_dims = [
        (in_dim, hidden_width),        # l1
        (hidden_width, hidden_width),  # l2
        (hidden_width, 1),             # l3
        (in_dim, hidden_width),        # l4
        (hidden_width, hidden_width),  # l5
        (hidden_width, 1),             # l6
    ]
    params = {}
    keys = jax.random.split(key, 2 * len(layer_dims))
    for i, (fan_in, fan_out) in enumerate(layer_dims):
        bound = 1.0 / jnp.sqrt(jnp.float32(fan_in))
        w = jax.random.uniform(keys[2 * i], (fan_in, fan_out),
                               minval=-bound, maxval=bound, dtype=jnp.float32)
        b = jax.random.uniform(keys[2 * i + 1], (1, fan_out),
                               minval=-bound, maxval=bound, dtype=jnp.float32)
        params[f"w{i + 1}"] = w
        params[f"b{i + 1}"] = b
    return params


def critic_reference(s, a, params):
    """Pure-JAX reference of the same forward pass."""
    sa = jnp.concatenate([s, a], axis=1)

    def head(w_a, b_a, w_b, b_b, w_c, b_c):
        h = jnp.maximum(sa @ w_a + b_a, 0.0)
        h = jnp.maximum(h @ w_b + b_b, 0.0)
        return h @ w_c + b_c

    q1 = head(params["w1"], params["b1"], params["w2"], params["b2"],
              params["w3"], params["b3"])
    q2 = head(params["w4"], params["b4"], params["w5"], params["b5"],
              params["w6"], params["b6"])
    return q1, q2


if __name__ == "__main__":
    state_dim = 12
    action_dim = 4
    hidden_width = 32

    key = jax.random.PRNGKey(0)
    k_params, k_s, k_a, k_s2, k_a2 = jax.random.split(key, 5)

    params = init_critic_params(k_params, state_dim, action_dim, hidden_width)
    packed = pack_critic_params(params, state_dim, action_dim, hidden_width)

    # Small batch: single grid step, full-array blocks.
    batch = 8
    s = jax.random.normal(k_s, (batch, state_dim), dtype=jnp.float32)
    a = jax.random.normal(k_a, (batch, action_dim), dtype=jnp.float32)
    q1, q2 = critic_forward(s, a, packed)
    jax.block_until_ready((q1, q2))
    r1, r2 = critic_reference(s, a, params)
    assert q1.shape == (batch, 1) and q2.shape == (batch, 1)
    assert jnp.allclose(q1, r1, atol=1e-4, rtol=1e-4)
    assert jnp.allclose(q2, r2, atol=1e-4, rtol=1e-4)

    # Larger batch: exercises the tiled / even-grid / tail-padding path.
    batch2 = 2500
    s2 = jax.random.normal(k_s2, (batch2, state_dim), dtype=jnp.float32)
    a2 = jax.random.normal(k_a2, (batch2, action_dim), dtype=jnp.float32)
    q1b, q2b = critic_forward(s2, a2, packed)
    jax.block_until_ready((q1b, q2b))
    r1b, r2b = critic_reference(s2, a2, params)
    assert jnp.allclose(q1b, r1b, atol=1e-4, rtol=1e-4)
    assert jnp.allclose(q2b, r2b, atol=1e-4, rtol=1e-4)

    print("KERNEL_OK")
</pallas_src>

<mosaic_0001>
module attributes {stable_mosaic.version = 11 : i64} {
  func.func @critic_kernel(%arg0: i32, %arg1: memref<16x8xf32, #tpu.memory_space<vmem>>, %arg2: memref<64x16xf32, #tpu.memory_space<vmem>>, %arg3: memref<64x64xf32, #tpu.memory_space<vmem>>, %arg4: memref<8x64xf32, #tpu.memory_space<vmem>>, %arg5: memref<64x8xf32, #tpu.memory_space<vmem>>, %arg6: memref<8x8xf32, #tpu.memory_space<vmem>>) attributes {dimension_semantics = [#tpu.dimension_semantics<parallel>], iteration_bounds = array<i64: 1>, scalar_prefetch = 0 : i64, scratch_operands = 0 : i64, tpu.core_type = #tpu.core_type<tc>, window_params = [{transform_indices = @transform_0, window_bounds = array<i64: 16, 8>}, {pipeline_mode = #tpu.pipeline_mode<synchronous>, transform_indices = @transform_1, window_bounds = array<i64: 64, 16>}, {pipeline_mode = #tpu.pipeline_mode<synchronous>, transform_indices = @transform_2, window_bounds = array<i64: 64, 64>}, {pipeline_mode = #tpu.pipeline_mode<synchronous>, transform_indices = @transform_3, window_bounds = array<i64: 8, 64>}, {pipeline_mode = #tpu.pipeline_mode<synchronous>, transform_indices = @transform_4, window_bounds = array<i64: 64, 8>}, {transform_indices = @transform_5, window_bounds = array<i64: 8, 8>}]} {
    %c0 = arith.constant 0 : index
    %c0_0 = arith.constant 0 : index
    %0 = vector.load %arg1[%c0, %c0_0] : memref<16x8xf32, #tpu.memory_space<vmem>>, vector<16x8xf32>
    %c0_1 = arith.constant 0 : index
    %c0_2 = arith.constant 0 : index
    %1 = vector.load %arg5[%c0_1, %c0_2] : memref<64x8xf32, #tpu.memory_space<vmem>>, vector<64x8xf32>
    %c0_3 = arith.constant 0 : index
    %c0_4 = arith.constant 0 : index
    %2 = vector.load %arg2[%c0_3, %c0_4] : memref<64x16xf32, #tpu.memory_space<vmem>>, vector<64x16xf32>
    %cst = arith.constant dense<0.000000e+00> : vector<64x8xf32>
    %3 = tpu.matmul %2, %0, %cst {dimension_numbers = #tpu.dot_dimension_numbers<[1], [0], [0], [1], [0, 0, 1, 1], [], []>} : vector<64x16xf32>, vector<16x8xf32>, vector<64x8xf32> -> vector<64x8xf32>
    %4 = vector.extract_strided_slice %1 {offsets = [0, 0], sizes = [64, 1], strides = [1, 1]} : vector<64x8xf32> to vector<64x1xf32>
    %5 = vector.broadcast %4 : vector<64x1xf32> to vector<64x8xf32>
    %6 = arith.addf %3, %5 : vector<64x8xf32>
    %cst_5 = arith.constant 0.000000e+00 : f32
    %7 = vector.broadcast %cst_5 : f32 to vector<64x8xf32>
    %8 = arith.maximumf %6, %7 : vector<64x8xf32>
    %c0_6 = arith.constant 0 : index
    %c0_7 = arith.constant 0 : index
    %9 = vector.load %arg3[%c0_6, %c0_7] : memref<64x64xf32, #tpu.memory_space<vmem>>, vector<64x64xf32>
    %cst_8 = arith.constant dense<0.000000e+00> : vector<64x8xf32>
    %10 = tpu.matmul %9, %8, %cst_8 {dimension_numbers = #tpu.dot_dimension_numbers<[1], [0], [0], [1], [0, 0, 1, 1], [], []>} : vector<64x64xf32>, vector<64x8xf32>, vector<64x8xf32> -> vector<64x8xf32>
    %11 = vector.extract_strided_slice %1 {offsets = [0, 1], sizes = [64, 1], strides = [1, 1]} : vector<64x8xf32> to vector<64x1xf32>
    %12 = vector.broadcast %11 : vector<64x1xf32> to vector<64x8xf32>
    %13 = arith.addf %10, %12 : vector<64x8xf32>
    %cst_9 = arith.constant 0.000000e+00 : f32
    %14 = vector.broadcast %cst_9 : f32 to vector<64x8xf32>
    %15 = arith.maximumf %13, %14 : vector<64x8xf32>
    %c0_10 = arith.constant 0 : index
    %c0_11 = arith.constant 0 : index
    %16 = vector.load %arg4[%c0_10, %c0_11] : memref<8x64xf32, #tpu.memory_space<vmem>>, vector<8x64xf32>
    %cst_12 = arith.constant dense<0.000000e+00> : vector<8x8xf32>
    %17 = tpu.matmul %16, %15, %cst_12 {dimension_numbers = #tpu.dot_dimension_numbers<[1], [0], [0], [1], [0, 0, 1, 1], [], []>} : vector<8x64xf32>, vector<64x8xf32>, vector<8x8xf32> -> vector<8x8xf32>
    %18 = vector.extract_strided_slice %1 {offsets = [0, 2], sizes = [8, 1], strides = [1, 1]} : vector<64x8xf32> to vector<8x1xf32>
    %19 = vector.broadcast %18 : vector<8x1xf32> to vector<8x8xf32>
    %20 = arith.addf %17, %19 : vector<8x8xf32>
    %c0_13 = arith.constant 0 : index
    %c0_14 = arith.constant 0 : index
    %21 = vector.load %arg6[%c0_13, %c0_14] : memref<8x8xf32, #tpu.memory_space<vmem>>, vector<8x8xf32>
    tpu.vector_store %arg6[%c0_13, %c0_14], %20 {strides = array<i32>} : memref<8x8xf32, #tpu.memory_space<vmem>>, vector<8x8xf32>,
    return
  }
  func.func @transform_0(%arg0: i32) -> (i32, i32) {
    %c0_i32 = arith.constant 0 : i32
    %c0_i32_0 = arith.constant 0 : i32
    return %c0_i32, %arg0 : i32, i32
  }
  func.func @transform_1(%arg0: i32) -> (i32, i32) {
    %c0_i32 = arith.constant 0 : i32
    %c0_i32_0 = arith.constant 0 : i32
    %c0_i32_1 = arith.constant 0 : i32
    return %c0_i32, %c0_i32_0 : i32, i32
  }
  func.func @transform_2(%arg0: i32) -> (i32, i32) {
    %c0_i32 = arith.constant 0 : i32
    %c0_i32_0 = arith.constant 0 : i32
    %c0_i32_1 = arith.constant 0 : i32
    return %c0_i32, %c0_i32_0 : i32, i32
  }
  func.func @transform_3(%arg0: i32) -> (i32, i32) {
    %c0_i32 = arith.constant 0 : i32
    %c0_i32_0 = arith.constant 0 : i32
    %c0_i32_1 = arith.constant 0 : i32
    return %c0_i32, %c0_i32_0 : i32, i32
  }
  func.func @transform_4(%arg0: i32) -> (i32, i32) {
    %c0_i32 = arith.constant 0 : i32
    %c0_i32_0 = arith.constant 0 : i32
    %c0_i32_1 = arith.constant 0 : i32
    return %c0_i32, %c0_i32_0 : i32, i32
  }
  func.func @transform_5(%arg0: i32) -> (i32, i32) {
    %c0_i32 = arith.constant 0 : i32
    %c0_i32_0 = arith.constant 0 : i32
    return %c0_i32, %arg0 : i32, i32
  }
}

</mosaic_0001>

<llo_original>
// kernel: critic_forward.1
$region0: #{critic_forward.1}
  #allocation0 [shape = 'u32[]', space=smem, size = 0x4, offset = 0x4, fixed_abs, tag = 'smem constant byte address 0x4 - core index']
  #allocation1 [shape = 'u32[144,128]{1,0:T(1,128)}', space=vmem, size = 0x12000, scoped, tag = 'internal scratch']
  %s0 = inlined_call_operand.vmem [shape: f32[16,8], index: 0, kind: input, shape index: {}]
  %s1 = inlined_call_operand.vmem [shape: f32[64,16], index: 1, kind: input, shape index: {}]
  %s2 = inlined_call_operand.vmem [shape: f32[64,64], index: 2, kind: input, shape index: {}]
  %s3 = inlined_call_operand.vmem [shape: f32[8,64], index: 3, kind: input, shape index: {}]
  %s4 = inlined_call_operand.vmem [shape: f32[64,8], index: 4, kind: input, shape index: {}]
  %s5 = inlined_call_operand.vmem [shape: f32[8,8], index: 5, kind: output, shape index: {}]
  %s6 = sld [smem:[#allocation0]]
  $region30: #{critic_forward.1} parent=0
    _
  %s8 = ssub.s32 1, %s6
  %s9 = scalar_select 0, %s8, %s6
  // Predicated region
  $region2: #{critic_forward.1} parent=0 // pred_check
    _
  $region3: #{critic_forward.1} parent=0 // pred_check_branch
    %11 = sbr.rel (0) target = $region5
  $region4: #{critic_forward.1} parent=0 // pred_region
    _
  $region5: #{critic_forward.1} parent=0 // pred_fallthru
    _
  // Predicated region
  $region6: #{critic_forward.1} parent=0 // pred_check
    _
  $region7: #{critic_forward.1} parent=0 // pred_check_branch
    %13 = sbr.rel (0) target = $region9
  $region8: #{critic_forward.1} parent=0 // pred_region
    _
  $region9: #{critic_forward.1} parent=0 // pred_fallthru
    _
  // Predicated region
  $region10: #{critic_forward.1} parent=0 // pred_check
    _
  $region11: #{critic_forward.1} parent=0 // pred_check_branch
    %15 = sbr.rel (0) target = $region13
  $region12: #{critic_forward.1} parent=0 // pred_region
    _
  $region13: #{critic_forward.1} parent=0 // pred_fallthru
    _
  // Predicated region
  $region14: #{critic_forward.1} parent=0 // pred_check
    _
  $region15: #{critic_forward.1} parent=0 // pred_check_branch
    %17 = sbr.rel (0) target = $region17
  $region16: #{critic_forward.1} parent=0 // pred_region
    _
  $region17: #{critic_forward.1} parent=0 // pred_fallthru
    _
  // Predicated region
  $region18: #{critic_forward.1} parent=0 // pred_check
    _
  $region19: #{critic_forward.1} parent=0 // pred_check_branch
    %19 = sbr.rel (0) target = $region21
  $region20: #{critic_forward.1} parent=0 // pred_region
    _
  $region21: #{critic_forward.1} parent=0 // pred_fallthru
    _
  %v20 = vld [vmem:[%s0] sm:$0xff]
  %v21 = vld [vmem:[%s0 + $0x8] sm:$0xff]
  %v22 = vld [vmem:[%s4] sm:$0xff]
  %v23 = vld [vmem:[%s4 + $0x8] sm:$0xff]
  %v24 = vld [vmem:[%s4 + $0x10] sm:$0xff]
  %v25 = vld [vmem:[%s4 + $0x18] sm:$0xff]
  %v26 = vld [vmem:[%s4 + $0x20] sm:$0xff]
  %v27 = vld [vmem:[%s4 + $0x28] sm:$0xff]
  %v28 = vld [vmem:[%s4 + $0x30] sm:$0xff]
  %v29 = vld [vmem:[%s4 + $0x38] sm:$0xff]
  %v30 = vld [vmem:[%s1] sm:$0xff]
  %v31 = vld [vmem:[%s1 + $0x8] sm:$0xff]
  %v32 = vld [vmem:[%s1 + $0x10] sm:$0xff]
  %v33 = vld [vmem:[%s1 + $0x18] sm:$0xff]
  %v34 = vld [vmem:[%s1 + $0x20] sm:$0xff]
  %v35 = vld [vmem:[%s1 + $0x28] sm:$0xff]
  %v36 = vld [vmem:[%s1 + $0x30] sm:$0xff]
  %v37 = vld [vmem:[%s1 + $0x38] sm:$0xff]
  %39 = vset.pattern.permute.xlu0 0
  %40 = vperm.xlu0 %39, %v22
  %v41 = vpop.permute.xlu0 %40
  %44 = vset.pattern.permute.xlu0 0
  %45 = vperm.xlu0 %44, %v23
  %v46 = vpop.permute.xlu0 %45
  %49 = vset.pattern.permute.xlu0 0
  %50 = vperm.xlu0 %49, %v24
  %v51 = vpop.permute.xlu0 %50
  %54 = vset.pattern.permute.xlu0 0
  %55 = vperm.xlu0 %54, %v25
  %v56 = vpop.permute.xlu0 %55
  %59 = vset.pattern.permute.xlu0 0
  %60 = vperm.xlu0 %59, %v26
  %v61 = vpop.permute.xlu0 %60
  %64 = vset.pattern.permute.xlu0 0
  %65 = vperm.xlu0 %64, %v27
  %v66 = vpop.permute.xlu0 %65
  %69 = vset.pattern.permute.xlu0 0
  %70 = vperm.xlu0 %69, %v28
  %v71 = vpop.permute.xlu0 %70
  %74 = vset.pattern.permute.xlu0 0
  %75 = vperm.xlu0 %74, %v29
  %v76 = vpop.permute.xlu0 %75
  %vm78 = vcmask 130048
  %v80 = vsel %vm78, %v30, 0
  %v83 = vsel %vm78, %v31, 0
  %v86 = vsel %vm78, %v32, 0
  %v89 = vsel %vm78, %v33, 0
  %v92 = vsel %vm78, %v34, 0
  %v95 = vsel %vm78, %v35, 0
  %v98 = vsel %vm78, %v36, 0
  %v101 = vsel %vm78, %v37, 0
  %103 = vmatprep.subr.mxu0 0.0
  %104 = vmatpush1.msra.mxu0 %v20
  %105 = vmatprep.subr.mxu0 0.0
  %106 = vmatpush1.msra.mxu0 %v21
  %107 = vmatprep.subr.mxu0 0.0
  %108 = vmatpush1.msra.mxu0 0.0
  %109 = vmatprep.subr.mxu0 0.0
  %110 = vmatpush1.msra.mxu0 0.0
  %111 = vmatprep.subr.mxu0 0.0
  %112 = vmatpush1.msra.mxu0 0.0
  %113 = vmatprep.subr.mxu0 0.0
  %114 = vmatpush1.msra.mxu0 0.0
  %115 = vmatprep.subr.mxu0 0.0
  %116 = vmatpush1.msra.mxu0 0.0
  %117 = vmatprep.subr.mxu0 0.0
  %118 = vmatpush1.msra.mxu0 0.0
  %119 = vmatprep.subr.mxu0 0.0
  %120 = vmatpush1.msra.mxu0 0.0
  %121 = vmatprep.subr.mxu0 0.0
  %122 = vmatpush1.msra.mxu0 0.0
  %123 = vmatprep.subr.mxu0 0.0
  %124 = vmatpush1.msra.mxu0 0.0
  %125 = vmatprep.subr.mxu0 0.0
  %126 = vmatpush1.msra.mxu0 0.0
  %127 = vmatprep.subr.mxu0 0.0
  %128 = vmatpush1.msra.mxu0 0.0
  %129 = vmatprep.subr.mxu0 0.0
  %130 = vmatpush1.msra.mxu0 0.0
  %131 = vmatprep.subr.mxu0 0.0
  %132 = vmatpush1.msra.mxu0 0.0
  %133 = vmatprep.subr.mxu0 0.0
  %134 = vmatpush1.msra.mxu0 0.0
  %135 = vmatprep.subr.mxu0 0.0
  %136 = vmatpush1.msra.mxu0 0.0
  %137 = vmatprep.subr.mxu0 0.0
  %138 = vmatpush1.msra.mxu0 0.0
  %139 = vmatprep.subr.mxu0 0.0
  %140 = vmatpush1.msra.mxu0 0.0
  %141 = vmatprep.subr.mxu0 0.0
  %142 = vmatpush1.msra.mxu0 0.0
  %143 = vmatprep.subr.mxu0 0.0
  %144 = vmatpush1.msra.mxu0 0.0
  %145 = vmatprep.subr.mxu0 0.0
  %146 = vmatpush1.msra.mxu0 0.0
  %147 = vmatprep.subr.mxu0 0.0
  %148 = vmatpush1.msra.mxu0 0.0
  %149 = vmatprep.subr.mxu0 0.0
  %150 = vmatpush1.msra.mxu0 0.0
  %151 = vmatprep.subr.mxu0 0.0
  %152 = vmatpush1.msra.mxu0 0.0
  %153 = vmatprep.subr.mxu0 0.0
  %154 = vmatpush1.msra.mxu0 0.0
  %155 = vmatprep.subr.mxu0 0.0
  %156 = vmatpush1.msra.mxu0 0.0
  %157 = vmatprep.subr.mxu0 0.0
  %158 = vmatpush1.msra.mxu0 0.0
  %159 = vmatprep.subr.mxu0 0.0
  %160 = vmatpush1.msra.mxu0 0.0
  %161 = vmatprep.subr.mxu0 0.0
  %162 = vmatpush1.msra.mxu0 0.0
  %163 = vmatprep.subr.mxu0 0.0
  %164 = vmatpush1.msra.mxu0 0.0
  %165 = vmatprep.subr.mxu0 0.0
  %166 = vmatpush1.msra.mxu0 0.0
  %167 = vmatprep.mubr.f32.mxu0 0.0
  %168 = vmatmul.mubr.f32.gmra.mrb[0].mxu0 %v80
  %v169 = vpop.f32.mrb[0].mxu0
  %v170 = vadd.f32 %v41, %v169
  %v171 = vpop.f32.mrb[0].mxu0
  %172 = vmatprep.mubr.f32.mxu0 0.0
  %173 = vmatmul.mubr.f32.gmra.mrb[0].mxu0 %v83
  %v174 = vpop.f32.mrb[0].mxu0
  %v175 = vadd.f32 %v46, %v174
  %v176 = vpop.f32.mrb[0].mxu0
  %177 = vmatprep.mubr.f32.mxu0 0.0
  %178 = vmatmul.mubr.f32.gmra.mrb[0].mxu0 %v86
  %v179 = vpop.f32.mrb[0].mxu0
  %v180 = vadd.f32 %v51, %v179
  %v181 = vpop.f32.mrb[0].mxu0
  %182 = vmatprep.mubr.f32.mxu0 0.0
  %183 = vmatmul.mubr.f32.gmra.mrb[0].mxu0 %v89
  %v184 = vpop.f32.mrb[0].mxu0
  %v185 = vadd.f32 %v56, %v184
  %v186 = vpop.f32.mrb[0].mxu0
  %187 = vmatprep.mubr.f32.mxu0 0.0
  %188 = vmatmul.mubr.f32.gmra.mrb[0].mxu0 %v92
  %v189 = vpop.f32.mrb[0].mxu0
  %v190 = vadd.f32 %v61, %v189
  %v191 = vpop.f32.mrb[0].mxu0
  %192 = vmatprep.mubr.f32.mxu0 0.0
  %193 = vmatmul.mubr.f32.gmra.mrb[0].mxu0 %v95
  %v194 = vpop.f32.mrb[0].mxu0
  %v195 = vadd.f32 %v66, %v194
  %v196 = vpop.f32.mrb[0].mxu0
  %197 = vmatprep.mubr.f32.mxu0 0.0
  %198 = vmatmul.mubr.f32.gmra.mrb[0].mxu0 %v98
  %v199 = vpop.f32.mrb[0].mxu0
  %v200 = vadd.f32 %v71, %v199
  %v201 = vpop.f32.mrb[0].mxu0
  %202 = vmatprep.mubr.f32.mxu0 0.0
  %203 = vmatmul.mubr.f32.gmra.mrb[0].mxu0 %v101
  %v204 = vpop.f32.mrb[0].mxu0
  %v205 = vadd.f32 %v76, %v204
  %v206 = vpop.f32.mrb[0].mxu0
  %207 = vdwg.mxu0
  %v208 = vmax.f32 %v170, 0.0
  %v209 = vmax.f32 %v175, 0.0
  %v210 = vmax.f32 %v180, 0.0
  %v211 = vmax.f32 %v185, 0.0
  %v212 = vmax.f32 %v190, 0.0
  %v213 = vmax.f32 %v195, 0.0
  %v214 = vmax.f32 %v200, 0.0
  %v215 = vmax.f32 %v205, 0.0
  %v216 = vld [vmem:[%s2] sm:$0xff]
  %v217 = vld [vmem:[%s2 + $0x8] sm:$0xff]
  %v218 = vld [vmem:[%s2 + $0x10] sm:$0xff]
  %v219 = vld [vmem:[%s2 + $0x18] sm:$0xff]
  %v220 = vld [vmem:[%s2 + $0x20] sm:$0xff]
  %v221 = vld [vmem:[%s2 + $0x28] sm:$0xff]
  %v222 = vld [vmem:[%s2 + $0x30] sm:$0xff]
  %v223 = vld [vmem:[%s2 + $0x38] sm:$0xff]
  %224 = vset.pattern.permute.xlu0 1
  %225 = vperm.xlu0 %224, %v22
  %v226 = vpop.permute.xlu0 %225
  %228 = vset.pattern.permute.xlu0 1
  %229 = vperm.xlu0 %228, %v23
  %v230 = vpop.permute.xlu0 %229
  %232 = vset.pattern.permute.xlu0 1
  %233 = vperm.xlu0 %232, %v24
  %v234 = vpop.permute.xlu0 %233
  %236 = vset.pattern.permute.xlu0 1
  %237 = vperm.xlu0 %236, %v25
  %v238 = vpop.permute.xlu0 %237
  %240 = vset.pattern.permute.xlu0 1
  %241 = vperm.xlu0 %240, %v26
  %v242 = vpop.permute.xlu0 %241
  %244 = vset.pattern.permute.xlu0 1
  %245 = vperm.xlu0 %244, %v27
  %v246 = vpop.permute.xlu0 %245
  %248 = vset.pattern.permute.xlu0 1
  %249 = vperm.xlu0 %248, %v28
  %v250 = vpop.permute.xlu0 %249
  %252 = vset.pattern.permute.xlu0 1
  %253 = vperm.xlu0 %252, %v29
  %v254 = vpop.permute.xlu0 %253
  %vm256 = vcmask 523264
  %v258 = vsel %vm256, %v216, 0
  %v261 = vsel %vm256, %v217, 0
  %v264 = vsel %vm256, %v218, 0
  %v267 = vsel %vm256, %v219, 0
  %v270 = vsel %vm256, %v220, 0
  %v273 = vsel %vm256, %v221, 0
  %v276 = vsel %vm256, %v222, 0
  %v279 = vsel %vm256, %v223, 0
  %281 = vmatprep.subr.mxu0 0.0
  %282 = vmatpush1.msra.mxu0 %v208
  %283 = vmatprep.subr.mxu0 0.0
  %284 = vmatpush1.msra.mxu0 %v209
  %285 = vmatprep.subr.mxu0 0.0
  %286 = vmatpush1.msra.mxu0 %v210
  %287 = vmatprep.subr.mxu0 0.0
  %288 = vmatpush1.msra.mxu0 %v211
  %289 = vmatprep.subr.mxu0 0.0
  %290 = vmatpush1.msra.mxu0 %v212
  %291 = vmatprep.subr.mxu0 0.0
  %292 = vmatpush1.msra.mxu0 %v213
  %293 = vmatprep.subr.mxu0 0.0
  %294 = vmatpush1.msra.mxu0 %v214
  %295 = vmatprep.subr.mxu0 0.0
  %296 = vmatpush1.msra.mxu0 %v215
  %297 = vmatprep.subr.mxu0 0.0
  %298 = vmatpush1.msra.mxu0 0.0
  %299 = vmatprep.subr.mxu0 0.0
  %300 = vmatpush1.msra.mxu0 0.0
  %301 = vmatprep.subr.mxu0 0.0
  %302 = vmatpush1.msra.mxu0 0.0
  %303 = vmatprep.subr.mxu0 0.0
  %304 = vmatpush1.msra.mxu0 0.0
  %305 = vmatprep.subr.mxu0 0.0
  %306 = vmatpush1.msra.mxu0 0.0
  %307 = vmatprep.subr.mxu0 0.0
  %308 = vmatpush1.msra.mxu0 0.0
  %309 = vmatprep.subr.mxu0 0.0
  %310 = vmatpush1.msra.mxu0 0.0
  %311 = vmatprep.subr.mxu0 0.0
  %312 = vmatpush1.msra.mxu0 0.0
  %313 = vmatprep.subr.mxu0 0.0
  %314 = vmatpush1.msra.mxu0 0.0
  %315 = vmatprep.subr.mxu0 0.0
  %316 = vmatpush1.msra.mxu0 0.0
  %317 = vmatprep.subr.mxu0 0.0
  %318 = vmatpush1.msra.mxu0 0.0
  %319 = vmatprep.subr.mxu0 0.0
  %320 = vmatpush1.msra.mxu0 0.0
  %321 = vmatprep.subr.mxu0 0.0
  %322 = vmatpush1.msra.mxu0 0.0
  %323 = vmatprep.subr.mxu0 0.0
  %324 = vmatpush1.msra.mxu0 0.0
  %325 = vmatprep.subr.mxu0 0.0
  %326 = vmatpush1.msra.mxu0 0.0
  %327 = vmatprep.subr.mxu0 0.0
  %328 = vmatpush1.msra.mxu0 0.0
  %329 = vmatprep.subr.mxu0 0.0
  %330 = vmatpush1.msra.mxu0 0.0
  %331 = vmatprep.subr.mxu0 0.0
  %332 = vmatpush1.msra.mxu0 0.0
  %333 = vmatprep.subr.mxu0 0.0
  %334 = vmatpush1.msra.mxu0 0.0
  %335 = vmatprep.subr.mxu0 0.0
  %336 = vmatpush1.msra.mxu0 0.0
  %337 = vmatprep.subr.mxu0 0.0
  %338 = vmatpush1.msra.mxu0 0.0
  %339 = vmatprep.subr.mxu0 0.0
  %340 = vmatpush1.msra.mxu0 0.0
  %341 = vmatprep.subr.mxu0 0.0
  %342 = vmatpush1.msra.mxu0 0.0
  %343 = vmatprep.subr.mxu0 0.0
  %344 = vmatpush1.msra.mxu0 0.0
  %345 = vmatprep.mubr.f32.mxu0 0.0
  %346 = vmatmul.mubr.f32.gmra.mrb[0].mxu0 %v258
  %v347 = vpop.f32.mrb[0].mxu0
  %v348 = vadd.f32 %v226, %v347
  %v349 = vpop.f32.mrb[0].mxu0
  %350 = vmatprep.mubr.f32.mxu0 0.0
  %351 = vmatmul.mubr.f32.gmra.mrb[0].mxu0 %v261
  %v352 = vpop.f32.mrb[0].mxu0
  %v353 = vadd.f32 %v230, %v352
  %v354 = vpop.f32.mrb[0].mxu0
  %355 = vmatprep.mubr.f32.mxu0 0.0
  %356 = vmatmul.mubr.f32.gmra.mrb[0].mxu0 %v264
  %v357 = vpop.f32.mrb[0].mxu0
  %v358 = vadd.f32 %v234, %v357
  %v359 = vpop.f32.mrb[0].mxu0
  %360 = vmatprep.mubr.f32.mxu0 0.0
  %361 = vmatmul.mubr.f32.gmra.mrb[0].mxu0 %v267
  %v362 = vpop.f32.mrb[0].mxu0
  %v363 = vadd.f32 %v238, %v362
  %v364 = vpop.f32.mrb[0].mxu0
  %365 = vmatprep.mubr.f32.mxu0 0.0
  %366 = vmatmul.mubr.f32.gmra.mrb[0].mxu0 %v270
  %v367 = vpop.f32.mrb[0].mxu0
  %v368 = vadd.f32 %v242, %v367
  %v369 = vpop.f32.mrb[0].mxu0
  %370 = vmatprep.mubr.f32.mxu0 0.0
  %371 = vmatmul.mubr.f32.gmra.mrb[0].mxu0 %v273
  %v372 = vpop.f32.mrb[0].mxu0
  %v373 = vadd.f32 %v246, %v372
  %v374 = vpop.f32.mrb[0].mxu0
  %375 = vmatprep.mubr.f32.mxu0 0.0
  %376 = vmatmul.mubr.f32.gmra.mrb[0].mxu0 %v276
  %v377 = vpop.f32.mrb[0].mxu0
  %v378 = vadd.f32 %v250, %v377
  %v379 = vpop.f32.mrb[0].mxu0
  %380 = vmatprep.mubr.f32.mxu0 0.0
  %381 = vmatmul.mubr.f32.gmra.mrb[0].mxu0 %v279
  %v382 = vpop.f32.mrb[0].mxu0
  %v383 = vadd.f32 %v254, %v382
  %v384 = vpop.f32.mrb[0].mxu0
  %385 = vdwg.mxu0
  %v386 = vmax.f32 %v348, 0.0
  %v387 = vmax.f32 %v353, 0.0
  %v388 = vmax.f32 %v358, 0.0
  %v389 = vmax.f32 %v363, 0.0
  %v390 = vmax.f32 %v368, 0.0
  %v391 = vmax.f32 %v373, 0.0
  %v392 = vmax.f32 %v378, 0.0
  %v393 = vmax.f32 %v383, 0.0
  %v394 = vld [vmem:[%s3] sm:$0xff]
  %395 = vset.pattern.permute.xlu0 2
  %396 = vperm.xlu0 %395, %v22
  %v397 = vpop.permute.xlu0 %396
  %v400 = vsel %vm256, %v394, 0
  %402 = vmatprep.subr.mxu0 0.0
  %403 = vmatpush1.msra.mxu0 %v386
  %404 = vmatprep.subr.mxu0 0.0
  %405 = vmatpush1.msra.mxu0 %v387
  %406 = vmatprep.subr.mxu0 0.0
  %407 = vmatpush1.msra.mxu0 %v388
  %408 = vmatprep.subr.mxu0 0.0
  %409 = vmatpush1.msra.mxu0 %v389
  %410 = vmatprep.subr.mxu0 0.0
  %411 = vmatpush1.msra.mxu0 %v390
  %412 = vmatprep.subr.mxu0 0.0
  %413 = vmatpush1.msra.mxu0 %v391
  %414 = vmatprep.subr.mxu0 0.0
  %415 = vmatpush1.msra.mxu0 %v392
  %416 = vmatprep.subr.mxu0 0.0
  %417 = vmatpush1.msra.mxu0 %v393
  %418 = vmatprep.subr.mxu0 0.0
  %419 = vmatpush1.msra.mxu0 0.0
  %420 = vmatprep.subr.mxu0 0.0
  %421 = vmatpush1.msra.mxu0 0.0
  %422 = vmatprep.subr.mxu0 0.0
  %423 = vmatpush1.msra.mxu0 0.0
  %424 = vmatprep.subr.mxu0 0.0
  %425 = vmatpush1.msra.mxu0 0.0
  %426 = vmatprep.subr.mxu0 0.0
  %427 = vmatpush1.msra.mxu0 0.0
  %428 = vmatprep.subr.mxu0 0.0
  %429 = vmatpush1.msra.mxu0 0.0
  %430 = vmatprep.subr.mxu0 0.0
  %431 = vmatpush1.msra.mxu0 0.0
  %432 = vmatprep.subr.mxu0 0.0
  %433 = vmatpush1.msra.mxu0 0.0
  %434 = vmatprep.subr.mxu0 0.0
  %435 = vmatpush1.msra.mxu0 0.0
  %436 = vmatprep.subr.mxu0 0.0
  %437 = vmatpush1.msra.mxu0 0.0
  %438 = vmatprep.subr.mxu0 0.0
  %439 = vmatpush1.msra.mxu0 0.0
  %440 = vmatprep.subr.mxu0 0.0
  %441 = vmatpush1.msra.mxu0 0.0
  %442 = vmatprep.subr.mxu0 0.0
  %443 = vmatpush1.msra.mxu0 0.0
  %444 = vmatprep.subr.mxu0 0.0
  %445 = vmatpush1.msra.mxu0 0.0
  %446 = vmatprep.subr.mxu0 0.0
  %447 = vmatpush1.msra.mxu0 0.0
  %448 = vmatprep.subr.mxu0 0.0
  %449 = vmatpush1.msra.mxu0 0.0
  %450 = vmatprep.subr.mxu0 0.0
  %451 = vmatpush1.msra.mxu0 0.0
  %452 = vmatprep.subr.mxu0 0.0
  %453 = vmatpush1.msra.mxu0 0.0
  %454 = vmatprep.subr.mxu0 0.0
  %455 = vmatpush1.msra.mxu0 0.0
  %456 = vmatprep.subr.mxu0 0.0
  %457 = vmatpush1.msra.mxu0 0.0
  %458 = vmatprep.subr.mxu0 0.0
  %459 = vmatpush1.msra.mxu0 0.0
  %460 = vmatprep.subr.mxu0 0.0
  %461 = vmatpush1.msra.mxu0 0.0
  %462 = vmatprep.subr.mxu0 0.0
  %463 = vmatpush1.msra.mxu0 0.0
  %464 = vmatprep.subr.mxu0 0.0
  %465 = vmatpush1.msra.mxu0 0.0
  %466 = vmatprep.mubr.f32.mxu0 0.0
  %467 = vmatmul.mubr.f32.gmra.mrb[0].mxu0 %v400
  %v468 = vpop.f32.mrb[0].mxu0
  %v469 = vadd.f32 %v397, %v468
  %v470 = vpop.f32.mrb[0].mxu0
  %471 = vdwg.mxu0
  %vm472 = vcmask 64512
  %473 = vst.msk [vmem:[%s5] sm:$0xff] %vm472, %v469
  // Predicated region
  $region22: #{critic_forward.1} parent=0 // pred_check
    _
  $region23: #{critic_forward.1} parent=0 // pred_check_branch
    %475 = sbr.rel (0) target = $region25
  $region24: #{critic_forward.1} parent=0 // pred_region
    _
  $region25: #{critic_forward.1} parent=0 // pred_fallthru
    _
  // Predicated region
  $region26: #{critic_forward.1} parent=0 // pred_check
    _
  $region27: #{critic_forward.1} parent=0 // pred_check_branch
    %477 = sbr.rel (0) target = $region29
  $region28: #{critic_forward.1} parent=0 // pred_region
    _
  $region29: #{critic_forward.1} parent=0 // pred_fallthru
    _

</llo_original>
